<compile_context>
chip_gen: v7x
topology: tpu7x:2x2x1
jax: 0.10.0
libtpu: 0.0.40
codegen_flags: <defaults>
</compile_context>

<pallas_src>
import functools
import math

import jax
import jax.numpy as jnp
from jax import lax
from jax.experimental import pallas as pl
from jax.experimental.pallas import tpu as pltpu

EPS = 1e-15
ATANH_CLAMP = 1.0 - 1e-7
PROJ_EPS = 1e-5
LANES = 128
MAX_TILE = 8192   # DMA block width (lanes)
MAX_SUB = 1024    # compute strip width (lanes) -> bounds vreg live ranges


# ---------------- small helpers ----------------

def _round_up(a, b):
    return (a + b - 1) // b * b


def _cdiv(a, b):
    return (a + b - 1) // b


def _artanh(z):
    z = jnp.clip(z, -ATANH_CLAMP, ATANH_CLAMP)
    return 0.5 * jnp.log((1.0 + z) / (1.0 - z))


def _fold_lanes(v, width):
    """(R, width) -> (R, 128) partial sums via lane-aligned chunk adds (VPU only)."""
    acc = v[:, 0:LANES]
    for k in range(1, width // LANES):
        acc = acc + v[:, k * LANES:(k + 1) * LANES]
    return acc


def _strip(nsub, sub, body):
    """Run body(lane_offset) over nsub sub-slices of width `sub`.

    An explicit fori_loop (not a static Python loop) bounds vreg live ranges so a
    large DMA tile does not force spills in the compute body.
    """
    if nsub <= 1:
        body(0)
    else:
        def step(i, carry):
            body(pl.multiple_of(i * sub, sub))
            return carry
        lax.fori_loop(0, nsub, step, 0)


# ---- pass 1: expmap0 (staged) + gyro-midpoint partial sums (pure reduction) ----

def _expmap_midpoint_kernel(x_ref, y_ref, num_ref, den_ref, *,
                            c, hw, tile, sub, need_mask):
    j = pl.program_id(1)
    sc = math.sqrt(c)
    maxnorm = (1.0 - PROJ_EPS) / sc

    @pl.when(j == 0)
    def _():
        num_ref[...] = jnp.zeros_like(num_ref)
        den_ref[...] = jnp.zeros_like(den_ref)

    def body(off):
        x = x_ref[:, pl.ds(off, sub)].astype(jnp.float32)           # (C, sub)
        # expmap0 + project; norm and 1/norm come from one rsqrt (EUP fusion).
        xn2 = jnp.sum(x * x, axis=0, keepdims=True)                  # (1, sub)
        r = lax.rsqrt(jnp.maximum(xn2, EPS))                         # 1/|x|
        th = jnp.tanh(sc * (xn2 * r))                                # tanh(sqrt(c)|x|)
        yn = th * (1.0 / sc)                                         # |expmap0(x)| analytically
        psc = jnp.minimum(maxnorm / yn, 1.0)                         # ball projection scale
        y = ((th * (1.0 / sc)) * r * psc) * x
        y_ref[:, pl.ds(off, sub)] = y                                # stage for passes 2/3
        ynp = jnp.minimum(yn, maxnorm)
        lam = 2.0 / jnp.maximum(1.0 - c * ynp * ynp, EPS)            # conformal factor

        num_c = lam * y                                              # (C, sub)
        den_c = lam - 1.0                                            # (1, sub)
        if need_mask:  # statically elided when H*W already fills the tiles
            col = j * tile + off + lax.broadcasted_iota(jnp.int32, (1, sub), 1)
            valid = col < hw
            num_c = jnp.where(valid, num_c, 0.0)
            den_c = jnp.where(valid, den_c, 0.0)
        num_ref[...] += _fold_lanes(num_c, sub)
        den_ref[...] += _fold_lanes(den_c, sub)

    _strip(tile // sub, sub, body)


# ---- pass 2: logmap_mu (staged) + Frechet-variance partial sums ----

def _logmap_var_kernel(y_ref, mu_ref, s_ref, v_ref, asum_ref, *,
                       c, hw, tile, sub, need_mask):
    j = pl.program_id(1)
    sc = math.sqrt(c)

    @pl.when(j == 0)
    def _():
        asum_ref[...] = jnp.zeros_like(asum_ref)

    mu = mu_ref[...]                  # (C, 1)
    nmu = -mu
    mu2 = s_ref[0]                    # |mu|^2
    coef_v = s_ref[1]                 # 2 / (sqrt(c) * lambda_mu)

    def body(off):
        y = y_ref[:, pl.ds(off, sub)]                                # (C, sub) f32 on ball
        y2 = jnp.sum(y * y, axis=0, keepdims=True)
        ab = jnp.sum(nmu * y, axis=0, keepdims=True)                 # <-mu, y>
        num = (1.0 + 2.0 * c * ab + c * y2) * nmu + (1.0 - c * mu2) * y
        den = 1.0 + 2.0 * c * ab + c * c * mu2 * y2
        w = num / jnp.maximum(den, EPS)                              # (-mu) (+)_c y
        wn2 = jnp.sum(w * w, axis=0, keepdims=True)
        rw = lax.rsqrt(jnp.maximum(wn2, EPS))                        # 1/|w|
        at = _artanh(sc * (wn2 * rw))                                # artanh(sqrt(c)|w|)
        v_ref[:, pl.ds(off, sub)] = (coef_v * at * rw) * w           # logmap_mu(y), staged

        a2 = at * at                                                 # dist^2 up to 4/c
        if need_mask:
            col = j * tile + off + lax.broadcasted_iota(jnp.int32, (1, sub), 1)
            a2 = jnp.where(col < hw, a2, 0.0)
        asum_ref[...] += _fold_lanes(a2, sub)

    _strip(tile // sub, sub, body)


# ---- pass 3: gyration transport + rescale + expmap at mean_on_ball + logmap0 ----

def _transport_output_kernel(v_ref, mu_ref, m_ref, s_ref, o_ref, *, c, tile, sub):
    sc = math.sqrt(c)
    c2 = c * c
    maxnorm = (1.0 - PROJ_EPS) / sc

    mu = mu_ref[...]                  # (C, 1)
    m = m_ref[...]                    # (C, 1) mean_on_ball
    nmu = -mu
    mu2 = s_ref[0]
    m2 = s_ref[1]
    recip_gd = s_ref[2]               # 1 / gyration denominator (pixel-independent)
    tfac = s_ref[3]                   # scale * lambda_mu / lambda_m
    lam_m = s_ref[4]
    up = s_ref[5]                     # <m, -mu>

    def body(off):
        v = v_ref[:, pl.ds(off, sub)]                                # (C, sub)
        # gyration gyr[m, -mu] v
        uw = jnp.sum(m * v, axis=0, keepdims=True)
        pw = jnp.sum(nmu * v, axis=0, keepdims=True)
        a_coef = -c2 * uw * mu2 + c * pw + 2.0 * c2 * up * pw
        b_coef = -c2 * pw * m2 - c * uw
        gyr = v + 2.0 * (a_coef * m + b_coef * nmu) * recip_gd
        # rescaled, transported tangent vector; expmap at m
        t = tfac * gyr
        tn2 = jnp.sum(t * t, axis=0, keepdims=True)
        rt = lax.rsqrt(jnp.maximum(tn2, EPS))
        second = (jnp.tanh(0.5 * sc * lam_m * (tn2 * rt)) * rt * (1.0 / sc)) * t
        # m (+)_c second
        b2 = jnp.sum(second * second, axis=0, keepdims=True)
        ab = jnp.sum(m * second, axis=0, keepdims=True)
        num = (1.0 + 2.0 * c * ab + c * b2) * m + (1.0 - c * m2) * second
        den = 1.0 + 2.0 * c * ab + c2 * m2 * b2
        ob = num / jnp.maximum(den, EPS)
        # project + logmap0; inverse norm reused from one rsqrt (no extra divide)
        on2 = jnp.sum(ob * ob, axis=0, keepdims=True)
        ro = lax.rsqrt(jnp.maximum(on2, EPS))
        on = on2 * ro
        proj = on > maxnorm
        ob = jnp.where(proj, (maxnorm * ro) * ob, ob)
        onp = jnp.where(proj, maxnorm, on)
        inv = jnp.where(proj, 1.0 / maxnorm, ro)
        o_ref[:, pl.ds(off, sub)] = (
            (_artanh(sc * onp) * (inv * (1.0 / sc))) * ob).astype(o_ref.dtype)

    _strip(tile // sub, sub, body)


# ---------------- wrapper ----------------

def poincare_batchnorm2d(x, mean_param, var_param, c=1.0):
    """Forward of PoincareBatchNorm2d. x: (B, C, H, W) NCHW; returns NCHW."""
    B, C, H, W = x.shape
    hw = H * W
    sc = math.sqrt(c)

    # (B, C, H*W) view: features on sublanes, pixels on lanes. No dtype copy here;
    # the kernels cast each tile to f32 on load.
    x3 = x.reshape(B, C, hw)

    # Lane-tile selection: big DMA blocks (<= MAX_TILE) with minimal padding.
    hw128 = _round_up(hw, LANES)
    ntiles = _cdiv(hw128, MAX_TILE)
    tile = _round_up(_cdiv(hw128, ntiles), LANES)
    hw_pad = tile * ntiles
    need_mask = hw_pad != hw
    if need_mask:
        x3 = jnp.pad(x3, ((0, 0), (0, 0), (0, hw_pad - hw)))

    # Compute strip width: largest multiple-of-128 divisor of the tile <= MAX_SUB.
    k = tile // LANES
    sub = LANES * max(d for d in range(1, MAX_SUB // LANES + 1) if k % d == 0)

    grid = (B, hw_pad // tile)

    data_spec = pl.BlockSpec((None, C, tile), lambda b, j: (b, 0, j))
    vec_spec = pl.BlockSpec((C, 1), lambda b, j: (0, 0))
    accC_spec = pl.BlockSpec((None, C, LANES), lambda b, j: (b, 0, 0))
    acc1_spec = pl.BlockSpec((None, 1, LANES), lambda b, j: (b, 0, 0))
    smem_spec = pl.BlockSpec(memory_space=pltpu.MemorySpace.SMEM)
    # Per-batch accumulators -> batch axis "parallel" (megacore), tile axis revisits
    # the accumulator block -> "arbitrary".
    reduce_params = pltpu.CompilerParams(
        dimension_semantics=("parallel", "arbitrary"))

    # ---- pass 1: expmap0 (staged to HBM) + gyro-midpoint partial sums ----
    y3, num, den = pl.pallas_call(
        functools.partial(_expmap_midpoint_kernel, c=c, hw=hw, tile=tile, sub=sub,
                          need_mask=need_mask),
        out_shape=(jax.ShapeDtypeStruct((B, C, hw_pad), jnp.float32),
                   jax.ShapeDtypeStruct((B, C, LANES), jnp.float32),
                   jax.ShapeDtypeStruct((B, 1, LANES), jnp.float32)),
        grid=grid,
        in_specs=[data_spec],
        out_specs=(data_spec, accC_spec, acc1_spec),
        compiler_params=reduce_params,
    )(x3)

    # ---- glue: Klein combination -> Poincare midpoint; hoist pixel-independent scalars ----
    num_v = jnp.sum(num, axis=(0, 2))                                # (C,)
    den_s = jnp.maximum(jnp.sum(den), EPS)
    z = num_v / den_s
    z2 = jnp.sum(z * z)
    mu = z / (1.0 + jnp.sqrt(jnp.maximum(1.0 - c * z2, EPS)))        # midpoint on the ball
    mu2 = jnp.sum(mu * mu)
    lam_mu = 2.0 / jnp.maximum(1.0 - c * mu2, EPS)
    coef_v = 2.0 / (sc * lam_mu)

    mp = mean_param.reshape(C).astype(jnp.float32)
    mpn = jnp.sqrt(jnp.maximum(jnp.sum(mp * mp), EPS))
    m = jnp.tanh(sc * mpn) * mp / (sc * mpn)                         # mean_on_ball
    m2 = jnp.sum(m * m)
    lam_m = 2.0 / jnp.maximum(1.0 - c * m2, EPS)
    up = -jnp.sum(m * mu)                                            # <m, -mu>
    recip_gd = 1.0 / jnp.maximum(1.0 + 2.0 * c * up + c * c * m2 * mu2, EPS)

    mu_col = mu.reshape(C, 1)
    m_col = m.reshape(C, 1)
    scal_a = jnp.stack([mu2, coef_v]).astype(jnp.float32)

    # ---- pass 2: logmap_mu (staged to HBM) + Frechet-variance partial sums ----
    v3, asum = pl.pallas_call(
        functools.partial(_logmap_var_kernel, c=c, hw=hw, tile=tile, sub=sub,
                          need_mask=need_mask),
        out_shape=(jax.ShapeDtypeStruct((B, C, hw_pad), jnp.float32),
                   jax.ShapeDtypeStruct((B, 1, LANES), jnp.float32)),
        grid=grid,
        in_specs=[data_spec, vec_spec, smem_spec],
        out_specs=(data_spec, acc1_spec),
        compiler_params=reduce_params,
    )(y3, mu_col, scal_a)

    # TODO(synk): frechet_variance denominator convention (N vs N-1) unverified; N used.
    input_var = (4.0 / c) * jnp.sum(asum) / (B * hw)
    scale = jnp.sqrt(var_param / (input_var + 1e-6))
    tfac = scale * lam_mu / lam_m
    scal_b = jnp.stack([mu2, m2, recip_gd, tfac, lam_m, up]).astype(jnp.float32)

    # ---- pass 3: transport + rescale + expmap + logmap0 (no accumulator -> fully parallel) ----
    out3 = pl.pallas_call(
        functools.partial(_transport_output_kernel, c=c, tile=tile, sub=sub),
        out_shape=jax.ShapeDtypeStruct((B, C, hw_pad), x.dtype),
        grid=grid,
        in_specs=[data_spec, vec_spec, vec_spec, smem_spec],
        out_specs=data_spec,
        compiler_params=pltpu.CompilerParams(
            dimension_semantics=("parallel", "parallel")),
    )(v3, mu_col, m_col, scal_b)

    if need_mask:
        out3 = out3[:, :, :hw]
    return out3.reshape(B, C, H, W)


# ---------- pure-JAX reference (correctness check only) ----------

def _reference(x, mean_param, var_param, c):
    B, C, H, W = x.shape
    sc = math.sqrt(c)

    def project(y):
        n = jnp.sqrt(jnp.maximum(jnp.sum(y * y, -1, keepdims=True), EPS))
        maxnorm = (1.0 - PROJ_EPS) / sc
        return jnp.where(n > maxnorm, y * (maxnorm / n), y)

    def mobius_add(a, b):
        a2 = jnp.sum(a * a, -1, keepdims=True)
        b2 = jnp.sum(b * b, -1, keepdims=True)
        ab = jnp.sum(a * b, -1, keepdims=True)
        num = (1.0 + 2.0 * c * ab + c * b2) * a + (1.0 - c * a2) * b
        den = 1.0 + 2.0 * c * ab + c * c * a2 * b2
        return num / jnp.maximum(den, EPS)

    rows = jnp.transpose(x, (0, 2, 3, 1)).reshape(-1, C).astype(jnp.float32)
    xn = jnp.sqrt(jnp.maximum(jnp.sum(rows * rows, -1, keepdims=True), EPS))
    y = project(jnp.tanh(sc * xn) * rows / (sc * xn))
    y2 = jnp.sum(y * y, -1, keepdims=True)
    lam = 2.0 / jnp.maximum(1.0 - c * y2, EPS)
    z = jnp.sum(lam * y, 0, keepdims=True) / jnp.maximum(
        jnp.sum(lam - 1.0, 0, keepdims=True), EPS)
    z2 = jnp.sum(z * z, -1, keepdims=True)
    mu = z / (1.0 + jnp.sqrt(jnp.maximum(1.0 - c * z2, EPS)))
    mp = mean_param.reshape(1, C).astype(jnp.float32)
    mpn = jnp.sqrt(jnp.maximum(jnp.sum(mp * mp, -1, keepdims=True), EPS))
    m = jnp.tanh(sc * mpn) * mp / (sc * mpn)

    w = mobius_add(-mu, y)
    wn = jnp.sqrt(jnp.maximum(jnp.sum(w * w, -1, keepdims=True), EPS))
    at = _artanh(sc * wn)
    mu2 = jnp.sum(mu * mu, -1, keepdims=True)
    lam_mu = 2.0 / jnp.maximum(1.0 - c * mu2, EPS)
    v = (2.0 / (sc * lam_mu)) * (at / wn) * w
    var = jnp.mean(((2.0 / sc) * at) ** 2)

    u, nm, c2 = m, -mu, c * c
    u2 = jnp.sum(u * u, -1, keepdims=True)
    p2 = jnp.sum(nm * nm, -1, keepdims=True)
    up = jnp.sum(u * nm, -1, keepdims=True)
    uw = jnp.sum(u * v, -1, keepdims=True)
    pw = jnp.sum(nm * v, -1, keepdims=True)
    A = -c2 * uw * p2 + c * pw + 2.0 * c2 * up * pw
    Bc = -c2 * pw * u2 - c * uw
    D = 1.0 + 2.0 * c * up + c2 * u2 * p2
    gyr = v + 2.0 * (A * u + Bc * nm) / jnp.maximum(D, EPS)
    lam_m = 2.0 / jnp.maximum(1.0 - c * u2, EPS)
    t = jnp.sqrt(var_param / (var + 1e-6)) * (lam_mu / lam_m) * gyr
    tn = jnp.sqrt(jnp.maximum(jnp.sum(t * t, -1, keepdims=True), EPS))
    second = jnp.tanh(0.5 * sc * lam_m * tn) * t / (sc * tn)
    ob = project(mobius_add(m, second))
    on = jnp.sqrt(jnp.maximum(jnp.sum(ob * ob, -1, keepdims=True), EPS))
    out = _artanh(sc * on) / (sc * on) * ob
    return jnp.transpose(out.reshape(B, H, W, C), (0, 3, 1, 2))


if __name__ == "__main__":
    key = jax.random.PRNGKey(0)
    k_x, k_m = jax.random.split(key)
    B, C, H, W = 2, 4, 16, 16
    x = 0.2 * jax.random.normal(k_x, (B, C, H, W), dtype=jnp.float32)

    # deterministic parameter init, as in the module's __init__
    mean_param = jnp.zeros((C,), jnp.float32)   # nn.Parameter(torch.zeros(features))
    var_param = jnp.float32(1.0)                # nn.Parameter(torch.tensor(1.0))
    curvature = 1.0                             # PoincareBall(c=1.0)

    out = jax.block_until_ready(poincare_batchnorm2d(x, mean_param, var_param, c=curvature))
    ref = _reference(x, mean_param, var_param, curvature)
    assert out.shape == x.shape
    assert bool(jnp.all(jnp.isfinite(out)))
    assert bool(jnp.allclose(out, ref, atol=5e-3, rtol=5e-3)), \
        float(jnp.max(jnp.abs(out - ref)))

    # non-trivial learned mean exercises the transport / gyration path
    mean_param2 = 0.05 * jax.random.normal(k_m, (C,), dtype=jnp.float32)
    out2 = jax.block_until_ready(poincare_batchnorm2d(x, mean_param2, var_param, c=curvature))
    ref2 = _reference(x, mean_param2, var_param, curvature)
    assert bool(jnp.all(jnp.isfinite(out2)))
    assert bool(jnp.allclose(out2, ref2, atol=5e-3, rtol=5e-3)), \
        float(jnp.max(jnp.abs(out2 - ref2)))

    print("KERNEL_OK")
</pallas_src>

<mosaic_0001>
module attributes {stable_mosaic.version = 11 : i64} {
  func.func @_expmap_midpoint_kernel(%arg0: i32, %arg1: i32, %arg2: memref<1x4x256xf32, #tpu.memory_space<vmem>>, %arg3: memref<1x4x256xf32, #tpu.memory_space<vmem>>, %arg4: memref<1x4x128xf32, #tpu.memory_space<vmem>>, %arg5: memref<1x1x128xf32, #tpu.memory_space<vmem>>) attributes {dimension_semantics = [#tpu.dimension_semantics<parallel>, #tpu.dimension_semantics<arbitrary>], iteration_bounds = array<i64: 2, 1>, scalar_prefetch = 0 : i64, scratch_operands = 0 : i64, tpu.core_type = #tpu.core_type<tc>, window_params = [{transform_indices = @transform_0, window_bounds = array<i64: 1, 4, 256>}, {transform_indices = @transform_1, window_bounds = array<i64: 1, 4, 256>}, {transform_indices = @transform_2, window_bounds = array<i64: 1, 4, 128>}, {transform_indices = @transform_3, window_bounds = array<i64: 1, 1, 128>}]} {
    %c0_i32 = arith.constant 0 : i32
    %0 = arith.cmpi eq, %arg1, %c0_i32 : i32
    %1 = arith.extui %0 : i1 to i32
    %c0_i32_0 = arith.constant 0 : i32
    %2 = arith.cmpi ne, %1, %c0_i32_0 : i32
    scf.if %2 {
      %cst_30 = arith.constant 0.000000e+00 : f32
      %63 = vector.broadcast %cst_30 : f32 to vector<4x128xf32>
      %c0_31 = arith.constant 0 : index
      %c0_32 = arith.constant 0 : index
      %c0_33 = arith.constant 0 : index
      %64 = vector.load %arg4[%c0_31, %c0_32, %c0_33] : memref<1x4x128xf32, #tpu.memory_space<vmem>>, vector<1x4x128xf32>
      %65 = vector.shape_cast %64 : vector<1x4x128xf32> to vector<4x128xf32>
      %66 = vector.shape_cast %63 : vector<4x128xf32> to vector<1x4x128xf32>
      tpu.vector_store %arg4[%c0_31, %c0_32, %c0_33], %66 {strides = array<i32>} : memref<1x4x128xf32, #tpu.memory_space<vmem>>, vector<1x4x128xf32>,
      %cst_34 = arith.constant 0.000000e+00 : f32
      %67 = vector.broadcast %cst_34 : f32 to vector<1x128xf32>
      %c0_35 = arith.constant 0 : index
      %c0_36 = arith.constant 0 : index
      %c0_37 = arith.constant 0 : index
      %68 = vector.load %arg5[%c0_35, %c0_36, %c0_37] : memref<1x1x128xf32, #tpu.memory_space<vmem>>, vector<1x1x128xf32>
      %69 = vector.shape_cast %68 : vector<1x1x128xf32> to vector<1x128xf32>
      %70 = vector.shape_cast %67 : vector<1x128xf32> to vector<1x1x128xf32>
      tpu.vector_store %arg5[%c0_35, %c0_36, %c0_37], %70 {strides = array<i32>} : memref<1x1x128xf32, #tpu.memory_space<vmem>>, vector<1x1x128xf32>,
    } else {
    }
    %c0 = arith.constant 0 : index
    %c0_1 = arith.constant 0 : index
    %c0_2 = arith.constant 0 : index
    %3 = vector.load %arg2[%c0, %c0_1, %c0_2] : memref<1x4x256xf32, #tpu.memory_space<vmem>>, vector<1x4x256xf32>
    %4 = vector.shape_cast %3 : vector<1x4x256xf32> to vector<4x256xf32>
    %5 = arith.mulf %4, %4 : vector<4x256xf32>
    %cst = arith.constant dense<0.000000e+00> : vector<256xf32>
    %6 = vector.multi_reduction <add>, %5, %cst [0] : vector<4x256xf32> to vector<256xf32>
    %7 = vector.shape_cast %6 : vector<256xf32> to vector<1x256xf32>
    %cst_3 = arith.constant 1.000000e-15 : f32
    %8 = vector.broadcast %cst_3 : f32 to vector<1x256xf32>
    %9 = arith.maximumf %7, %8 : vector<1x256xf32>
    %10 = math.rsqrt %9 : vector<1x256xf32>
    %11 = arith.mulf %7, %10 : vector<1x256xf32>
    %cst_4 = arith.constant 1.000000e+00 : f32
    %12 = vector.broadcast %cst_4 : f32 to vector<1x256xf32>
    %13 = arith.mulf %12, %11 : vector<1x256xf32>
    %14 = math.tanh %13 : vector<1x256xf32>
    %cst_5 = arith.constant 1.000000e+00 : f32
    %15 = vector.broadcast %cst_5 : f32 to vector<1x256xf32>
    %16 = arith.mulf %14, %15 : vector<1x256xf32>
    %cst_6 = arith.constant 0.999989986 : f32
    %17 = vector.broadcast %cst_6 : f32 to vector<1x256xf32>
    %18 = arith.divf %17, %16 : vector<1x256xf32>
    %cst_7 = arith.constant 1.000000e+00 : f32
    %19 = vector.broadcast %cst_7 : f32 to vector<1x256xf32>
    %20 = arith.minimumf %18, %19 : vector<1x256xf32>
    %cst_8 = arith.constant 1.000000e+00 : f32
    %21 = vector.broadcast %cst_8 : f32 to vector<1x256xf32>
    %22 = arith.mulf %14, %21 : vector<1x256xf32>
    %23 = arith.mulf %22, %10 : vector<1x256xf32>
    %24 = arith.mulf %23, %20 : vector<1x256xf32>
    %25 = vector.broadcast %24 : vector<1x256xf32> to vector<4x256xf32>
    %26 = arith.mulf %25, %4 : vector<4x256xf32>
    %c0_9 = arith.constant 0 : index
    %c0_10 = arith.constant 0 : index
    %c0_11 = arith.constant 0 : index
    %27 = vector.load %arg3[%c0_9, %c0_10, %c0_11] : memref<1x4x256xf32, #tpu.memory_space<vmem>>, vector<1x4x256xf32>
    %28 = vector.shape_cast %27 : vector<1x4x256xf32> to vector<4x256xf32>
    %29 = vector.shape_cast %26 : vector<4x256xf32> to vector<1x4x256xf32>
    tpu.vector_store %arg3[%c0_9, %c0_10, %c0_11], %29 {strides = array<i32>} : memref<1x4x256xf32, #tpu.memory_space<vmem>>, vector<1x4x256xf32>,
    %cst_12 = arith.constant 0.999989986 : f32
    %30 = vector.broadcast %cst_12 : f32 to vector<1x256xf32>
    %31 = arith.minimumf %16, %30 : vector<1x256xf32>
    %cst_13 = arith.constant 1.000000e+00 : f32
    %32 = vector.broadcast %cst_13 : f32 to vector<1x256xf32>
    %33 = arith.mulf %32, %31 : vector<1x256xf32>
    %34 = arith.mulf %33, %31 : vector<1x256xf32>
    %cst_14 = arith.constant 1.000000e+00 : f32
    %35 = vector.broadcast %cst_14 : f32 to vector<1x256xf32>
    %36 = arith.subf %35, %34 : vector<1x256xf32>
    %cst_15 = arith.constant 1.000000e-15 : f32
    %37 = vector.broadcast %cst_15 : f32 to vector<1x256xf32>
    %38 = arith.maximumf %36, %37 : vector<1x256xf32>
    %cst_16 = arith.constant 2.000000e+00 : f32
    %39 = vector.broadcast %cst_16 : f32 to vector<1x256xf32>
    %40 = arith.divf %39, %38 : vector<1x256xf32>
    %41 = vector.broadcast %40 : vector<1x256xf32> to vector<4x256xf32>
    %42 = arith.mulf %41, %26 : vector<4x256xf32>
    %cst_17 = arith.constant 1.000000e+00 : f32
    %43 = vector.broadcast %cst_17 : f32 to vector<1x256xf32>
    %44 = arith.subf %40, %43 : vector<1x256xf32>
    %c0_18 = arith.constant 0 : index
    %c0_19 = arith.constant 0 : index
    %c0_20 = arith.constant 0 : index
    %45 = vector.load %arg4[%c0_18, %c0_19, %c0_20] : memref<1x4x128xf32, #tpu.memory_space<vmem>>, vector<1x4x128xf32>
    %46 = vector.shape_cast %45 : vector<1x4x128xf32> to vector<4x128xf32>
    %47 = vector.extract_strided_slice %42 {offsets = [0, 0], sizes = [4, 128], strides = [1, 1]} : vector<4x256xf32> to vector<4x128xf32>
    %48 = vector.extract_strided_slice %42 {offsets = [0, 128], sizes = [4, 128], strides = [1, 1]} : vector<4x256xf32> to vector<4x128xf32>
    %49 = arith.addf %47, %48 : vector<4x128xf32>
    %50 = arith.addf %46, %49 : vector<4x128xf32>
    %c0_21 = arith.constant 0 : index
    %c0_22 = arith.constant 0 : index
    %c0_23 = arith.constant 0 : index
    %51 = vector.load %arg4[%c0_21, %c0_22, %c0_23] : memref<1x4x128xf32, #tpu.memory_space<vmem>>, vector<1x4x128xf32>
    %52 = vector.shape_cast %51 : vector<1x4x128xf32> to vector<4x128xf32>
    %53 = vector.shape_cast %50 : vector<4x128xf32> to vector<1x4x128xf32>
    tpu.vector_store %arg4[%c0_21, %c0_22, %c0_23], %53 {strides = array<i32>} : memref<1x4x128xf32, #tpu.memory_space<vmem>>, vector<1x4x128xf32>,
    %c0_24 = arith.constant 0 : index
    %c0_25 = arith.constant 0 : index
    %c0_26 = arith.constant 0 : index
    %54 = vector.load %arg5[%c0_24, %c0_25, %c0_26] : memref<1x1x128xf32, #tpu.memory_space<vmem>>, vector<1x1x128xf32>
    %55 = vector.shape_cast %54 : vector<1x1x128xf32> to vector<1x128xf32>
    %56 = vector.extract_strided_slice %44 {offsets = [0, 0], sizes = [1, 128], strides = [1, 1]} : vector<1x256xf32> to vector<1x128xf32>
    %57 = vector.extract_strided_slice %44 {offsets = [0, 128], sizes = [1, 128], strides = [1, 1]} : vector<1x256xf32> to vector<1x128xf32>
    %58 = arith.addf %56, %57 : vector<1x128xf32>
    %59 = arith.addf %55, %58 : vector<1x128xf32>
    %c0_27 = arith.constant 0 : index
    %c0_28 = arith.constant 0 : index
    %c0_29 = arith.constant 0 : index
    %60 = vector.load %arg5[%c0_27, %c0_28, %c0_29] : memref<1x1x128xf32, #tpu.memory_space<vmem>>, vector<1x1x128xf32>
    %61 = vector.shape_cast %60 : vector<1x1x128xf32> to vector<1x128xf32>
    %62 = vector.shape_cast %59 : vector<1x128xf32> to vector<1x1x128xf32>
    tpu.vector_store %arg5[%c0_27, %c0_28, %c0_29], %62 {strides = array<i32>} : memref<1x1x128xf32, #tpu.memory_space<vmem>>, vector<1x1x128xf32>,
    return
  }
  func.func @transform_0(%arg0: i32, %arg1: i32) -> (i32, i32, i32) {
    %c0_i32 = arith.constant 0 : i32
    %c0_i32_0 = arith.constant 0 : i32
    return %arg0, %c0_i32, %arg1 : i32, i32, i32
  }
  func.func @transform_1(%arg0: i32, %arg1: i32) -> (i32, i32, i32) {
    %c0_i32 = arith.constant 0 : i32
    %c0_i32_0 = arith.constant 0 : i32
    return %arg0, %c0_i32, %arg1 : i32, i32, i32
  }
  func.func @transform_2(%arg0: i32, %arg1: i32) -> (i32, i32, i32) {
    %c0_i32 = arith.constant 0 : i32
    %c0_i32_0 = arith.constant 0 : i32
    %c0_i32_1 = arith.constant 0 : i32
    return %arg0, %c0_i32, %c0_i32_0 : i32, i32, i32
  }
  func.func @transform_3(%arg0: i32, %arg1: i32) -> (i32, i32, i32) {
    %c0_i32 = arith.constant 0 : i32
    %c0_i32_0 = arith.constant 0 : i32
    %c0_i32_1 = arith.constant 0 : i32
    return %arg0, %c0_i32, %c0_i32_0 : i32, i32, i32
  }
}

</mosaic_0001>

<llo_original>
// kernel: tpu_custom_call.1
$region0: #{tpu_custom_call.1}
  #allocation0 [shape = 'u32[]', space=smem, size = 0x4, offset = 0x4, fixed_abs, tag = 'smem constant byte address 0x4 - core index']
  #allocation1 [shape = 'u32[144,128]{1,0:T(1,128)}', space=vmem, size = 0x12000, scoped, tag = 'internal scratch']
  %s0 = inlined_call_operand.hbm [shape: f32[2,4,256], index: 0, kind: input, shape index: {}]
  %s1 = inlined_call_operand.hbm [shape: f32[2,4,256], index: 1, kind: output, shape index: {0}]
  %s2 = inlined_call_operand.hbm [shape: f32[2,4,128], index: 2, kind: output, shape index: {1}]
  %s3 = inlined_call_operand.hbm [shape: f32[2,1,128], index: 3, kind: output, shape index: {2}]
  %4 = xla_tuple %s1, %s2, %s3
  %s5 = sld [smem:[#allocation0]]
  $region61: #{tpu_custom_call.1} parent=0
    _
  %s7 = ssub.s32 1, %s5
  %s8 = scalar_select 0, %s7, %s5
  $region1: #{tpu_custom_call.1} parent=0
    #allocation2 [shape = 'u8[8192]{0}', space=vmem, size = 0x2000, scoped, tag = 'input window, operand 0']
    #allocation3 [shape = 's32[2]{0}', space=sflag, size = 0x8, scoped, tag = 'scoped memory for tpu_custom_call.1']
    #allocation4 [shape = 's32[2]{0}', space=sflag, size = 0x8, scoped, tag = 'scoped memory for tpu_custom_call.1']
    #allocation5 [shape = 'u8[8192]{0}', space=vmem, size = 0x2000, scoped, tag = 'output window, operand 0']
    #allocation6 [shape = 'u8[4096]{0}', space=vmem, size = 0x1000, scoped, tag = 'output window, operand 1']
    #allocation7 [shape = 's32[2]{0}', space=sflag, size = 0x8, scoped, tag = 'scoped memory for tpu_custom_call.1']
    #allocation8 [shape = 'u8[1024]{0}', space=vmem, size = 0x400, scoped, tag = 'output window, operand 2']
    %9 = vsyncpa [#allocation3], 0
    %s10 = scalar_lea.sflag [#allocation3], 1
    %11 = vsyncpa %s10, 0
    %12 = vsyncpa [#allocation4], 0
    %s13 = scalar_lea.sflag [#allocation4], 1
    %14 = vsyncpa %s13, 0
    %15 = vsyncpa [#allocation7], 0
    %s16 = scalar_lea.sflag [#allocation7], 1
    %17 = vsyncpa %s16, 0
    loop: start=0, step=1, limit=4
    $region2: #{tpu_custom_call.1} parent=1 // loop_pre_header
      _
    $region3: #{tpu_custom_call.1} parent=1 // loop_header
      %s19 = sphi 0, %s23
      %p20 = scmp.ge.s32.totalorder %s19, 4
      %s26 = sphi 0, %s38
      %s27 = sphi 0, %s34
      %s28 = sphi 0, %s26
      %s29 = sphi 0, %s27
      %s30 = sphi 0, %s28
      %s31 = sphi 0, %s29
      %s43 = sphi 0, %s45
      %s46 = sphi 0, %s43
      %s47 = sphi 0, %s46
      %s63 = sphi 0, %s47
      %s71 = sphi 0, %s73
      %s74 = sphi 0, %s71
      %s75 = sphi 0, %s74
      %s91 = sphi 0, %s75
      %s97 = sphi 0, %s99
      %s100 = sphi 0, %s97
      %s101 = sphi 0, %s100
      %s117 = sphi 0, %s101
      %s123 = sphi 0, %s125
      %s126 = sphi 0, %s123
      %s127 = sphi 0, %s126
      %s143 = sphi 0, %s127
    $region4: #{tpu_custom_call.1} parent=1 // loop_header_branch
      %22 = sbr.rel (%p20) target = $region8
    $region5: #{tpu_custom_call.1} parent=1 // loop_body
      %s24 = ssub.s32 %s19, 1
      %s25 = ssub.s32 %s19, 2
      %s32 = sadd.s32 1, %s27
      %p33 = scmp.ge.s32.totalorder %s32, 1
      %s34 = scalar_select %p33, 0, %s32
      %s35 = sadd.s32 1, %s26
      %s36 = scalar_select %p33, %s35, %s26
      %p37 = scmp.ge.s32.totalorder %s36, 2
      %s38 = scalar_select %p37, 0, %s36
      %s39 = ssub.s32 %s26, %s38
      %s40 = ssub.s32 %s27, %s34
      %s41 = sor.u32 %s39, %s40
      %p42 = scmp.eq.s32.totalorder %s41, 0
      %s44 = sadd.s32 %s43, 1
      %s45 = scalar_select %p42, %s43, %s44
      %p48 = pneg %p42
      %p49 = scmp.eq.s32.totalorder %s19, 1
      %p50 = por %p48, %p49
      %p51 = scmp.ne.s32.totalorder %s43, %s46
      %p52 = scmp.eq.s32.totalorder %s19, 0
      %p53 = por %p51, %p52
      %p54 = scmp.ne.s32.totalorder %s43, %s46
      %p55 = scmp.eq.s32.totalorder %s24, 1
      %p56 = por %p54, %p55
      %p57 = scmp.ne.s32.totalorder %s46, %s47
      %p58 = scmp.eq.s32.totalorder %s24, 0
      %p59 = por %p57, %p58
      %p60 = scmp.ne.s32.totalorder %s46, %s47
      %p61 = scmp.eq.s32.totalorder %s25, 1
      %p62 = por %p60, %p61
      %p64 = scmp.ne.s32.totalorder %s47, %s63
      %p65 = scmp.eq.s32.totalorder %s25, 0
      %p66 = por %p64, %p65
      %s67 = ssub.s32 %s26, %s38
      %s68 = ssub.s32 %s27, %s34
      %s69 = sor.u32 %s67, %s68
      %p70 = scmp.eq.s32.totalorder %s69, 0
      %s72 = sadd.s32 %s71, 1
      %s73 = scalar_select %p70, %s71, %s72
      %p76 = pneg %p70
      %p77 = scmp.eq.s32.totalorder %s19, 1
      %p78 = por %p76, %p77
      %p79 = scmp.ne.s32.totalorder %s71, %s74
      %p80 = scmp.eq.s32.totalorder %s19, 0
      %p81 = por %p79, %p80
      %p82 = scmp.ne.s32.totalorder %s71, %s74
      %p83 = scmp.eq.s32.totalorder %s24, 1
      %p84 = por %p82, %p83
      %p85 = scmp.ne.s32.totalorder %s74, %s75
      %p86 = scmp.eq.s32.totalorder %s24, 0
      %p87 = por %p85, %p86
      %p88 = scmp.ne.s32.totalorder %s74, %s75
      %p89 = scmp.eq.s32.totalorder %s25, 1
      %p90 = por %p88, %p89
      %p92 = scmp.ne.s32.totalorder %s75, %s91
      %p93 = scmp.eq.s32.totalorder %s25, 0
      %p94 = por %p92, %p93
      %s95 = ssub.s32 %s26, %s38
      %p96 = scmp.eq.s32.totalorder %s95, 0
      %s98 = sadd.s32 %s97, 1
      %s99 = scalar_select %p96, %s97, %s98
      %p102 = pneg %p96
      %p103 = scmp.eq.s32.totalorder %s19, 1
      %p104 = por %p102, %p103
      %p105 = scmp.ne.s32.totalorder %s97, %s100
      %p106 = scmp.eq.s32.totalorder %s19, 0
      %p107 = por %p105, %p106
      %p108 = scmp.ne.s32.totalorder %s97, %s100
      %p109 = scmp.eq.s32.totalorder %s24, 1
      %p110 = por %p108, %p109
      %p111 = scmp.ne.s32.totalorder %s100, %s101
      %p112 = scmp.eq.s32.totalorder %s24, 0
      %p113 = por %p111, %p112
      %p114 = scmp.ne.s32.totalorder %s100, %s101
      %p115 = scmp.eq.s32.totalorder %s25, 1
      %p116 = por %p114, %p115
      %p118 = scmp.ne.s32.totalorder %s101, %s117
      %p119 = scmp.eq.s32.totalorder %s25, 0
      %p120 = por %p118, %p119
      %s121 = ssub.s32 %s26, %s38
      %p122 = scmp.eq.s32.totalorder %s121, 0
      %s124 = sadd.s32 %s123, 1
      %s125 = scalar_select %p122, %s123, %s124
      %p128 = pneg %p122
      %p129 = scmp.eq.s32.totalorder %s19, 1
      %p130 = por %p128, %p129
      %p131 = scmp.ne.s32.totalorder %s123, %s126
      %p132 = scmp.eq.s32.totalorder %s19, 0
      %p133 = por %p131, %p132
      %p134 = scmp.ne.s32.totalorder %s123, %s126
      %p135 = scmp.eq.s32.totalorder %s24, 1
      %p136 = por %p134, %p135
      %p137 = scmp.ne.s32.totalorder %s126, %s127
      %p138 = scmp.eq.s32.totalorder %s24, 0
      %p139 = por %p137, %p138
      %p140 = scmp.ne.s32.totalorder %s126, %s127
      %p141 = scmp.eq.s32.totalorder %s25, 1
      %p142 = por %p140, %p141
      %p144 = scmp.ne.s32.totalorder %s127, %s143
      %p145 = scmp.eq.s32.totalorder %s25, 0
      %p146 = por %p144, %p145
      %p147 = scmp.le.s32.totalorder 1, %s19
      %p148 = scmp.lt.s32.totalorder %s19, 3
      %p149 = pnand %p147, %p148
      %p150 = pneg %p149
      // Predicated region
      $region9: #{tpu_custom_call.1} parent=5 // pred_check
        _
      $region10: #{tpu_custom_call.1} parent=5 // pred_check_branch
        %152 = sbr.rel (%p149) target = $region12
      $region11: #{tpu_custom_call.1} parent=5 // pred_region
        %s153 = ssub.s32 %s19, 1
      $region12: #{tpu_custom_call.1} parent=5 // pred_fallthru
        _
      %p154 = scmp.lt.s32.totalorder %s19, 2
      // Predicated region
      $region13: #{tpu_custom_call.1} parent=5 // pred_check
        %p155 = pneg %p154
      $region14: #{tpu_custom_call.1} parent=5 // pred_check_branch
        %157 = sbr.rel (%p155) target = $region16
      $region15: #{tpu_custom_call.1} parent=5 // pred_region
        // Predicated region
        $region17: #{tpu_custom_call.1} parent=15 // pred_check
          %p158 = pneg %p53
        $region18: #{tpu_custom_call.1} parent=15 // pred_check_branch
          %160 = sbr.rel (%p158) target = $region20
        $region19: #{tpu_custom_call.1} parent=15 // pred_region
          %s161 = sand.u32 %s43, 1
          %s162 = scalar_lea.sflag [#allocation3], %s161
          %s163 = sand.u32 %s43, 1
          %s164 = smul.addr %s163, 8
          %s165 = scalar_lea.vmem [#allocation2], %s164
          %s166 = smul.u32 2, %s27
          %s168 = ssub.s32 128, 128
          %169 = vsyncadd %s162, %s168
          %s170 = smul.addr %s26, 2
          %s171 = sadd.s32 %s166, %s170
          %s172 = smul.addr %s171, 64
          %s173 = scalar_lea.hbm %s0, %s172
          %s175 = sshll.u32 %s165, 4
          %s176 = int_to_ptr.vmem [resolvable:$true] %s175
          %178 = dma.hbm_to_vmem [thread:$0]  %s173, 128, %s176, %s162
        $region20: #{tpu_custom_call.1} parent=15 // pred_fallthru
          _
      $region16: #{tpu_custom_call.1} parent=5 // pred_fallthru
        _
      %p179 = scmp.le.s32.totalorder 1, %s19
      %p180 = scmp.lt.s32.totalorder %s19, 3
      %p181 = pnand %p179, %p180
      %p182 = pneg %p181
      // Predicated region
      $region21: #{tpu_custom_call.1} parent=5 // pred_check
        _
      $region22: #{tpu_custom_call.1} parent=5 // pred_check_branch
        %184 = sbr.rel (%p181) target = $region24
      $region23: #{tpu_custom_call.1} parent=5 // pred_region
        %s185 = ssub.s32 %s19, 1
        %s186 = sand.u32 %s46, 1
        %s187 = scalar_lea.sflag [#allocation3], %s186
        %s188 = sand.u32 %s46, 1
        %s189 = smul.addr %s188, 8
        %s190 = scalar_lea.vmem [#allocation2], %s189
        // Predicated region
        $region25: #{tpu_custom_call.1} parent=23 // pred_check
          %p191 = pneg %p59
        $region26: #{tpu_custom_call.1} parent=23 // pred_check_branch
          %193 = sbr.rel (%p191) target = $region28
        $region27: #{tpu_custom_call.1} parent=23 // pred_region
          %194 = dma.done %s187, 128
        $region28: #{tpu_custom_call.1} parent=23 // pred_fallthru
          _
        %s195 = sand.u32 %s46, 1
        %s196 = scalar_lea.sflag [#allocation3], %s195
        %s197 = sand.u32 %s46, 1
        %s198 = smul.addr %s197, 8
        %s199 = scalar_lea.vmem [#allocation2], %s198
        %p200 = pneg %p59
        %p201 = pneg %p56
        %p202 = pneg %p87
        %p203 = pneg %p84
        %s204 = sand.u32 %s74, 1
        %s205 = scalar_lea.sflag [#allocation4], %s204
        %s206 = sand.u32 %s74, 1
        %s207 = smul.addr %s206, 8
        %s208 = scalar_lea.vmem [#allocation5], %s207
        %p209 = pneg %p113
        %p210 = pneg %p110
        %s211 = sand.u32 %s24, 1
        %s212 = scalar_lea.sflag [#allocation7], %s211
        %s213 = sand.u32 %s100, 1
        %s214 = smul.addr %s213, 4
        %s215 = scalar_lea.vmem [#allocation6], %s214
        %p216 = pneg %p139
        %p217 = pneg %p136
        %s218 = sand.u32 %s24, 1
        %s219 = scalar_lea.sflag [#allocation7], %s218
        %s220 = sand.u32 %s126, 1
        %s221 = scalar_lea.vmem [#allocation8], %s220
        %s222 = smul.u32 2, %s29
        %s223 = smul.u32 2, %s29
        %p224 = scmp.eq.s32.totalorder %s29, 0
        // Predicated region
        $region29: #{tpu_custom_call.1} parent=23 // pred_check
          %p225 = pneg %p224
        $region30: #{tpu_custom_call.1} parent=23 // pred_check_branch
          %227 = sbr.rel (%p225) target = $region32
        $region31: #{tpu_custom_call.1} parent=23 // pred_region
          %228 = vst [vmem:[%s215] sm:$0xf] 0.0
          %229 = vst [vmem:[%s221] sm:$0x1] 0.0
        $region32: #{tpu_custom_call.1} parent=23 // pred_fallthru
          _
        %v230 = vld [vmem:[%s190] sm:$0xff]
        %v231 = vmul.f32 %v230, %v230
        %v233 = vcombine.high %v231, %v231
        %vm235 = vcmask 1043456
        %v236 = vsel %vm235, %v231, 0.0
        %v237 = vrot.slane %v236, 4
        %v238 = vadd.f32 %v236, %v237
        %v239 = vrot.slane %v238, 2
        %v240 = vadd.f32 %v238, %v239
        %v241 = vrot.slane %v240, 1
        %v242 = vadd.f32 %v240, %v241
        %v243 = vsel %vm235, %v233, 0.0
        %v244 = vrot.slane %v243, 4
        %v245 = vadd.f32 %v243, %v244
        %v246 = vrot.slane %v245, 2
        %v247 = vadd.f32 %v245, %v246
        %v248 = vrot.slane %v247, 1
        %v249 = vadd.f32 %v247, %v248
        %v250 = vmax.f32 %v242, 1e-15
        %v251 = vmax.f32 %v249, 1e-15
        %v252 = vrsqrt.pop %v250
        %v253 = vrsqrt.pop %v251
        %v254 = vmul.f32 %v242, %v252
        %v255 = vmul.f32 %v249, %v253
        %v256 = vtanh.pop %v254
        %v257 = vtanh.pop %v255
        %v258 = vrcp.pop %v256
        %v259 = vmul.f32 0.99999, %v258
        %v260 = vrcp.pop %v257
        %v261 = vmul.f32 0.99999, %v260
        %v262 = vmin.f32 %v259, 1.0
        %v263 = vmin.f32 %v261, 1.0
        %v264 = vmul.f32 %v256, %v252
        %v265 = vmul.f32 %v257, %v253
        %v266 = vmul.f32 %v264, %v262
        %v267 = vmul.f32 %v265, %v263
        %v269 = vcombine.high %v230, %v230
        %v271 = vmul.f32 %v266, %v230
        %v272 = vmul.f32 %v267, %v269
        %v275 = vcombine.low %v271, %v272
        %277 = vst [vmem:[%s208] sm:$0xff] %v275
        %v278 = vmin.f32 %v256, 0.99999
        %v279 = vmin.f32 %v257, 0.99999
        %v280 = vmul.f32 %v278, %v278
        %v281 = vmul.f32 %v279, %v279
        %v282 = vsub.f32 1.0, %v280
        %v283 = vsub.f32 1.0, %v281
        %v284 = vmax.f32 %v282, 1e-15
        %v285 = vmax.f32 %v283, 1e-15
        %v286 = vrcp.pop %v284
        %v287 = vmul.f32 2.0, %v286
        %v288 = vrcp.pop %v285
        %v289 = vmul.f32 2.0, %v288
        %v290 = vmul.f32 %v287, %v271
        %v291 = vmul.f32 %v289, %v272
        %v292 = vsub.f32 %v287, 1.0
        %v293 = vsub.f32 %v289, 1.0
        %v294 = vld [vmem:[%s215] sm:$0xf]
        %v295 = vadd.f32 %v290, %v291
        %v296 = vadd.f32 %v294, %v295
        %297 = vst [vmem:[%s215] sm:$0xf] %v296
        %v298 = vld [vmem:[%s221] sm:$0x1]
        %v299 = vadd.f32 %v292, %v293
        %v300 = vadd.f32 %v298, %v299
        %301 = vst [vmem:[%s221] sm:$0x1] %v300
        %s302 = sand.u32 %s74, 1
        %s303 = scalar_lea.sflag [#allocation4], %s302
        %s304 = sand.u32 %s74, 1
        %s305 = smul.addr %s304, 8
        %s306 = scalar_lea.vmem [#allocation5], %s305
        %s307 = sand.u32 %s24, 1
        %s308 = scalar_lea.sflag [#allocation7], %s307
        %s309 = sand.u32 %s100, 1
        %s310 = smul.addr %s309, 4
        %s311 = scalar_lea.vmem [#allocation6], %s310
        %s312 = sand.u32 %s24, 1
        %s313 = scalar_lea.sflag [#allocation7], %s312
        %s314 = sand.u32 %s126, 1
        %s315 = scalar_lea.vmem [#allocation8], %s314
        // Predicated region
        $region33: #{tpu_custom_call.1} parent=23 // pred_check
          %p316 = pneg %p84
        $region34: #{tpu_custom_call.1} parent=23 // pred_check_branch
          %318 = sbr.rel (%p316) target = $region36
        $region35: #{tpu_custom_call.1} parent=23 // pred_region
          %s319 = smul.u32 2, %s29
          %s321 = ssub.s32 128, 128
          %322 = vsyncadd %s303, %s321
          %s323 = smul.addr %s28, 2
          %s324 = sadd.s32 %s319, %s323
          %s325 = smul.addr %s324, 64
          %s326 = scalar_lea.hbm %s1, %s325
          %s328 = sshll.u32 %s306, 4
          %s329 = int_to_ptr.vmem [resolvable:$true] %s328
          %331 = dma.vmem_to_hbm [thread:$0]  %s329, 128, %s326, %s303
        $region36: #{tpu_custom_call.1} parent=23 // pred_fallthru
          _
        // Predicated region
        $region37: #{tpu_custom_call.1} parent=23 // pred_check
          %p332 = pneg %p110
        $region38: #{tpu_custom_call.1} parent=23 // pred_check_branch
          %334 = sbr.rel (%p332) target = $region40
        $region39: #{tpu_custom_call.1} parent=23 // pred_region
          %s336 = ssub.s32 64, 64
          %337 = vsyncadd %s308, %s336
          %s338 = smul.addr %s28, 64
          %s339 = scalar_lea.hbm %s2, %s338
          %s341 = sshll.u32 %s311, 4
          %s342 = int_to_ptr.vmem [resolvable:$true] %s341
          %344 = dma.vmem_to_hbm [thread:$0]  %s342, 64, %s339, %s308
        $region40: #{tpu_custom_call.1} parent=23 // pred_fallthru
          _
        // Predicated region
        $region41: #{tpu_custom_call.1} parent=23 // pred_check
          %p345 = pneg %p136
        $region42: #{tpu_custom_call.1} parent=23 // pred_check_branch
          %347 = sbr.rel (%p345) target = $region44
        $region43: #{tpu_custom_call.1} parent=23 // pred_region
          %s349 = ssub.s32 16, 16
          %350 = vsyncadd %s313, %s349
          %s351 = smul.addr %s28, 16
          %s352 = scalar_lea.hbm %s3, %s351
          %s354 = sshll.u32 %s315, 4
          %s355 = int_to_ptr.vmem [resolvable:$true] %s354
          %357 = dma.vmem_to_hbm [thread:$0]  %s355, 16, %s352, %s313
        $region44: #{tpu_custom_call.1} parent=23 // pred_fallthru
          _
      $region24: #{tpu_custom_call.1} parent=5 // pred_fallthru
        _
      %p358 = scmp.le.s32.totalorder 2, %s19
      // Predicated region
      $region45: #{tpu_custom_call.1} parent=5 // pred_check
        %p359 = pneg %p358
      $region46: #{tpu_custom_call.1} parent=5 // pred_check_branch
        %361 = sbr.rel (%p359) target = $region48
      $region47: #{tpu_custom_call.1} parent=5 // pred_region
        %s362 = ssub.s32 %s19, 2
        // Predicated region
        $region49: #{tpu_custom_call.1} parent=47 // pred_check
          %p363 = pneg %p90
        $region50: #{tpu_custom_call.1} parent=47 // pred_check_branch
          %365 = sbr.rel (%p363) target = $region52
        $region51: #{tpu_custom_call.1} parent=47 // pred_region
          %s366 = sand.u32 %s75, 1
          %s367 = scalar_lea.sflag [#allocation4], %s366
          %s368 = sand.u32 %s75, 1
          %s369 = smul.addr %s368, 8
          %s370 = scalar_lea.vmem [#allocation5], %s369
          %371 = dma.done %s367, 128
        $region52: #{tpu_custom_call.1} parent=47 // pred_fallthru
          _
        // Predicated region
        $region53: #{tpu_custom_call.1} parent=47 // pred_check
          %p372 = pneg %p116
        $region54: #{tpu_custom_call.1} parent=47 // pred_check_branch
          %374 = sbr.rel (%p372) target = $region56
        $region55: #{tpu_custom_call.1} parent=47 // pred_region
          %s375 = sand.u32 %s25, 1
          %s376 = scalar_lea.sflag [#allocation7], %s375
          %s377 = sand.u32 %s101, 1
          %s378 = smul.addr %s377, 4
          %s379 = scalar_lea.vmem [#allocation6], %s378
          %380 = dma.done %s376, 64
        $region56: #{tpu_custom_call.1} parent=47 // pred_fallthru
          _
        // Predicated region
        $region57: #{tpu_custom_call.1} parent=47 // pred_check
          %p381 = pneg %p142
        $region58: #{tpu_custom_call.1} parent=47 // pred_check_branch
          %383 = sbr.rel (%p381) target = $region60
        $region59: #{tpu_custom_call.1} parent=47 // pred_region
          %s384 = sand.u32 %s25, 1
          %s385 = scalar_lea.sflag [#allocation7], %s384
          %s386 = sand.u32 %s127, 1
          %s387 = scalar_lea.vmem [#allocation8], %s386
          %388 = dma.done %s385, 16
        $region60: #{tpu_custom_call.1} parent=47 // pred_fallthru
          _
      $region48: #{tpu_custom_call.1} parent=5 // pred_fallthru
        _
    $region6: #{tpu_custom_call.1} parent=1 // loop_footer
      %s23 = sadd.s32 1, %s19
    $region7: #{tpu_custom_call.1} parent=1 // loop_footer_branch
      %18 = sbr.rel target = $region3
    $region8: #{tpu_custom_call.1} parent=1 // loop_exit
      _
    %389 = vsyncpa [#allocation3], 1
    %s390 = scalar_lea.sflag [#allocation3], 1
    %391 = vsyncpa %s390, 1
    %392 = vsyncpa [#allocation4], 1
    %s393 = scalar_lea.sflag [#allocation4], 1
    %394 = vsyncpa %s393, 1
    %395 = vsyncpa [#allocation7], 1
    %s396 = scalar_lea.sflag [#allocation7], 1
    %397 = vsyncpa %s396, 1

</llo_original>
